<compile_context>
chip_gen: v7x
topology: tpu7x:2x2x1
jax: 0.10.0
libtpu: 0.0.40
codegen_flags: <defaults>
</compile_context>

<pallas_src>
import jax
import jax.numpy as jnp
from jax.experimental import pallas as pl
from jax.experimental.pallas import tpu as pltpu


def _round_up(n, m):
    return ((n + m - 1) // m) * m


def _leaky_relu(x, alpha=0.2):
    return jnp.where(x >= 0, x, alpha * x)


def _sigmoid(x):
    # Same expression in kernel and reference so results match bit-for-bit-ish.
    return 1.0 / (1.0 + jnp.exp(-x))


# ----------------------------------------------------------------------------
# Kernel: batch-in-lanes MLP.  All refs are (features, lanes)-oriented.
# ----------------------------------------------------------------------------
def _disc_kernel(xt_ref, w1_ref, b1_ref, w2_ref, b2_ref, w3_ref, b3_ref,
                 ot_ref):
    # x^T block: (inC, TB) f32 -> bf16 in-kernel (review: no wrapper-side cast)
    xt = xt_ref[...].astype(jnp.bfloat16)

    # Layer 1: (h1, inC) @ (inC, TB) -> (h1, TB), f32 MXU accumulation.
    h1 = jnp.dot(w1_ref[...], xt, preferred_element_type=jnp.float32)
    h1 = _leaky_relu(h1 + b1_ref[...])

    # Layer 2: (h2, h1) @ (h1, TB) -> (h2, TB)
    h2 = jnp.dot(w2_ref[...], h1.astype(jnp.bfloat16),
                 preferred_element_type=jnp.float32)
    h2 = _leaky_relu(h2 + b2_ref[...])

    # Layer 3: (outC, h2) @ (h2, TB) -> (outC, TB)
    h3 = jnp.dot(w3_ref[...], h2.astype(jnp.bfloat16),
                 preferred_element_type=jnp.float32)
    h3 = _leaky_relu(h3 + b3_ref[...])

    # Sigmoid in f32 (exp on EUP).  Store is (outC, TB): lane-dense, no waste.
    ot_ref[...] = _sigmoid(h3).astype(ot_ref.dtype)


# ----------------------------------------------------------------------------
# One-time parameter preparation (hoisted out of the forward per the review).
# ----------------------------------------------------------------------------
def prepare_params(params):
    """params: dict w1,b1,w2,b2,w3,b3 with w_i (in, out) f32, b_i (1, out) f32.
    Returns device params: w_i (out, in) bf16, b_i (out, 1) f32."""
    dev = {}
    for i in (1, 2, 3):
        dev[f"w{i}"] = jnp.transpose(jnp.asarray(params[f"w{i}"])).astype(
            jnp.bfloat16)
        dev[f"b{i}"] = jnp.transpose(jnp.asarray(params[f"b{i}"])).astype(
            jnp.float32)
    return dev


def _choose_tb(B, *, max_tb=2048, min_tb=128):
    # Batch lives on the lane axis -> tile must be a multiple of 128.
    # Keep >=2 grid steps whenever B allows it (v7x megacore sharding), while
    # large tiles amortize the per-step overhead on v5e/v6e.
    b128 = _round_up(max(B, 1), 128)
    tb = min(max_tb, _round_up(pl.cdiv(b128, 2), 128))
    return max(tb, min_tb)


# ----------------------------------------------------------------------------
# Forward.  Jitted so the tiny pad/transpose/slice ops fuse with the call site.
# TODO(synk): if used inside a GAIL training step, call this under that step's
# jit (or fuse the BCE loss into the kernel) so the launch overhead amortizes.
# ----------------------------------------------------------------------------
@jax.jit
def discriminator1d_forward(x, dev_params):
    """x: (B, inC) float32.  dev_params from prepare_params.  Returns (B, outC)."""
    B, in_c = x.shape
    out_c = dev_params["w3"].shape[0]

    tb = _choose_tb(B)
    b_pad = _round_up(B, tb)

    # Batch-in-lanes input: (inC, b_pad) f32.  Zero-padded batch columns flow
    # through deterministically and are sliced away below.
    xt = jnp.pad(x, ((0, b_pad - B), (0, 0))).T

    pinned = lambda a: pl.BlockSpec(a.shape, lambda i: (0, 0))

    out_t = pl.pallas_call(
        _disc_kernel,
        out_shape=jax.ShapeDtypeStruct((out_c, b_pad), jnp.float32),
        grid=(b_pad // tb,),
        in_specs=[
            pl.BlockSpec((in_c, tb), lambda i: (0, i)),     # x^T batch tile
            pinned(dev_params["w1"]), pinned(dev_params["b1"]),
            pinned(dev_params["w2"]), pinned(dev_params["b2"]),
            pinned(dev_params["w3"]), pinned(dev_params["b3"]),
        ],
        out_specs=pl.BlockSpec((out_c, tb), lambda i: (0, i)),
        compiler_params=pltpu.CompilerParams(
            dimension_semantics=("parallel",)),
    )(xt, dev_params["w1"], dev_params["b1"],
      dev_params["w2"], dev_params["b2"],
      dev_params["w3"], dev_params["b3"])

    # Only the useful outC*B values are touched here (fuses under jit).
    return out_t[:, :B].T


# ----------------------------------------------------------------------------
# Init + pure-JAX reference (mirrors kernel precision: bf16 dots, f32 rest).
# ----------------------------------------------------------------------------
def init_params(key, in_channel, out_channel):
    """Deterministic init mimicking nn.Linear's uniform(-1/sqrt(fan_in), ...)."""
    h1 = out_channel * 16
    h2 = out_channel * 2
    dims = [(in_channel, h1), (h1, h2), (h2, out_channel)]
    params = {}
    keys = jax.random.split(key, 6)
    for i, (fan_in, fan_out) in enumerate(dims):
        bound = 1.0 / jnp.sqrt(jnp.float32(fan_in))
        w = jax.random.uniform(keys[2 * i], (fan_in, fan_out), jnp.float32,
                               -bound, bound)
        b = jax.random.uniform(keys[2 * i + 1], (1, fan_out), jnp.float32,
                               -bound, bound)
        params[f"w{i + 1}"] = w
        params[f"b{i + 1}"] = b
    return params


def reference_forward(x, params):
    bf = jnp.bfloat16
    h = jnp.dot(x.astype(bf), params["w1"].astype(bf),
                preferred_element_type=jnp.float32) + params["b1"]
    h = _leaky_relu(h)
    h = jnp.dot(h.astype(bf), params["w2"].astype(bf),
                preferred_element_type=jnp.float32) + params["b2"]
    h = _leaky_relu(h)
    h = jnp.dot(h.astype(bf), params["w3"].astype(bf),
                preferred_element_type=jnp.float32) + params["b3"]
    h = _leaky_relu(h)
    return _sigmoid(h)


if __name__ == "__main__":
    # Module-consistent small sizes:
    #   discriminatorIn = 4, discriminatorOut = 8 -> hidden dims 128 and 16.
    IN_C, OUT_C = 4, 8
    key = jax.random.PRNGKey(0)
    k_x, k_p, k_x2 = jax.random.split(key, 3)
    params = init_params(k_p, IN_C, OUT_C)
    dev_params = prepare_params(params)     # one-time prep, hoisted off the hot path

    # 1) Tiny batch (B=2): exercises batch padding + single-tile grid.
    x_small = jax.random.normal(k_x, (2, IN_C), dtype=jnp.float32)
    out_small = jax.block_until_ready(
        discriminator1d_forward(x_small, dev_params))
    ref_small = reference_forward(x_small, params)
    assert out_small.shape == (2, OUT_C)
    assert jnp.allclose(out_small, ref_small, atol=1e-4, rtol=1e-4)

    # 2) Larger batch (B=1024): exercises the 2-step parallel grid path.
    x_big = jax.random.normal(k_x2, (1024, IN_C), dtype=jnp.float32)
    out_big = jax.block_until_ready(
        discriminator1d_forward(x_big, dev_params))
    ref_big = reference_forward(x_big, params)
    assert out_big.shape == (1024, OUT_C)
    assert jnp.allclose(out_big, ref_big, atol=1e-4, rtol=1e-4)

    print("KERNEL_OK")
</pallas_src>

<mosaic_0001>
module attributes {stable_mosaic.version = 11 : i64} {
  func.func @_disc_kernel(%arg0: i32, %arg1: memref<4x128xf32, #tpu.memory_space<vmem>>, %arg2: memref<128x4xbf16, #tpu.memory_space<vmem>>, %arg3: memref<128x1xf32, #tpu.memory_space<vmem>>, %arg4: memref<16x128xbf16, #tpu.memory_space<vmem>>, %arg5: memref<16x1xf32, #tpu.memory_space<vmem>>, %arg6: memref<8x16xbf16, #tpu.memory_space<vmem>>, %arg7: memref<8x1xf32, #tpu.memory_space<vmem>>, %arg8: memref<8x128xf32, #tpu.memory_space<vmem>>) attributes {dimension_semantics = [#tpu.dimension_semantics<parallel>], iteration_bounds = array<i64: 1>, scalar_prefetch = 0 : i64, scratch_operands = 0 : i64, tpu.core_type = #tpu.core_type<tc>, window_params = [{transform_indices = @transform_0, window_bounds = array<i64: 4, 128>}, {pipeline_mode = #tpu.pipeline_mode<synchronous>, transform_indices = @transform_1, window_bounds = array<i64: 128, 4>}, {pipeline_mode = #tpu.pipeline_mode<synchronous>, transform_indices = @transform_2, window_bounds = array<i64: 128, 1>}, {pipeline_mode = #tpu.pipeline_mode<synchronous>, transform_indices = @transform_3, window_bounds = array<i64: 16, 128>}, {pipeline_mode = #tpu.pipeline_mode<synchronous>, transform_indices = @transform_4, window_bounds = array<i64: 16, 1>}, {pipeline_mode = #tpu.pipeline_mode<synchronous>, transform_indices = @transform_5, window_bounds = array<i64: 8, 16>}, {pipeline_mode = #tpu.pipeline_mode<synchronous>, transform_indices = @transform_6, window_bounds = array<i64: 8, 1>}, {transform_indices = @transform_7, window_bounds = array<i64: 8, 128>}]} {
    %c0 = arith.constant 0 : index
    %c0_0 = arith.constant 0 : index
    %0 = vector.load %arg1[%c0, %c0_0] : memref<4x128xf32, #tpu.memory_space<vmem>>, vector<4x128xf32>
    %1 = arith.truncf %0 : vector<4x128xf32> to vector<4x128xbf16>
    %c0_1 = arith.constant 0 : index
    %c0_2 = arith.constant 0 : index
    %2 = vector.load %arg2[%c0_1, %c0_2] : memref<128x4xbf16, #tpu.memory_space<vmem>>, vector<128x4xbf16>
    %cst = arith.constant dense<0.000000e+00> : vector<128x128xf32>
    %3 = tpu.matmul %2, %1, %cst {dimension_numbers = #tpu.dot_dimension_numbers<[1], [0], [0], [1], [0, 0, 1, 1], [], []>} : vector<128x4xbf16>, vector<4x128xbf16>, vector<128x128xf32> -> vector<128x128xf32>
    %c0_3 = arith.constant 0 : index
    %c0_4 = arith.constant 0 : index
    %4 = vector.load %arg3[%c0_3, %c0_4] : memref<128x1xf32, #tpu.memory_space<vmem>>, vector<128x1xf32>
    %5 = vector.broadcast %4 : vector<128x1xf32> to vector<128x128xf32>
    %6 = arith.addf %3, %5 : vector<128x128xf32>
    %cst_5 = arith.constant 0.000000e+00 : f32
    %7 = vector.broadcast %cst_5 : f32 to vector<128x128xf32>
    %8 = arith.cmpf oge, %6, %7 : vector<128x128xf32>
    %cst_6 = arith.constant 2.000000e-01 : f32
    %9 = vector.broadcast %cst_6 : f32 to vector<128x128xf32>
    %10 = arith.mulf %9, %6 : vector<128x128xf32>
    %11 = arith.select %8, %6, %10 : vector<128x128xi1>, vector<128x128xf32>
    %c0_7 = arith.constant 0 : index
    %c0_8 = arith.constant 0 : index
    %12 = vector.load %arg4[%c0_7, %c0_8] : memref<16x128xbf16, #tpu.memory_space<vmem>>, vector<16x128xbf16>
    %13 = arith.truncf %11 : vector<128x128xf32> to vector<128x128xbf16>
    %cst_9 = arith.constant dense<0.000000e+00> : vector<16x128xf32>
    %14 = tpu.matmul %12, %13, %cst_9 {dimension_numbers = #tpu.dot_dimension_numbers<[1], [0], [0], [1], [0, 0, 1, 1], [], []>} : vector<16x128xbf16>, vector<128x128xbf16>, vector<16x128xf32> -> vector<16x128xf32>
    %c0_10 = arith.constant 0 : index
    %c0_11 = arith.constant 0 : index
    %15 = vector.load %arg5[%c0_10, %c0_11] : memref<16x1xf32, #tpu.memory_space<vmem>>, vector<16x1xf32>
    %16 = vector.broadcast %15 : vector<16x1xf32> to vector<16x128xf32>
    %17 = arith.addf %14, %16 : vector<16x128xf32>
    %cst_12 = arith.constant 0.000000e+00 : f32
    %18 = vector.broadcast %cst_12 : f32 to vector<16x128xf32>
    %19 = arith.cmpf oge, %17, %18 : vector<16x128xf32>
    %cst_13 = arith.constant 2.000000e-01 : f32
    %20 = vector.broadcast %cst_13 : f32 to vector<16x128xf32>
    %21 = arith.mulf %20, %17 : vector<16x128xf32>
    %22 = arith.select %19, %17, %21 : vector<16x128xi1>, vector<16x128xf32>
    %c0_14 = arith.constant 0 : index
    %c0_15 = arith.constant 0 : index
    %23 = vector.load %arg6[%c0_14, %c0_15] : memref<8x16xbf16, #tpu.memory_space<vmem>>, vector<8x16xbf16>
    %24 = arith.truncf %22 : vector<16x128xf32> to vector<16x128xbf16>
    %cst_16 = arith.constant dense<0.000000e+00> : vector<8x128xf32>
    %25 = tpu.matmul %23, %24, %cst_16 {dimension_numbers = #tpu.dot_dimension_numbers<[1], [0], [0], [1], [0, 0, 1, 1], [], []>} : vector<8x16xbf16>, vector<16x128xbf16>, vector<8x128xf32> -> vector<8x128xf32>
    %c0_17 = arith.constant 0 : index
    %c0_18 = arith.constant 0 : index
    %26 = vector.load %arg7[%c0_17, %c0_18] : memref<8x1xf32, #tpu.memory_space<vmem>>, vector<8x1xf32>
    %27 = vector.broadcast %26 : vector<8x1xf32> to vector<8x128xf32>
    %28 = arith.addf %25, %27 : vector<8x128xf32>
    %cst_19 = arith.constant 0.000000e+00 : f32
    %29 = vector.broadcast %cst_19 : f32 to vector<8x128xf32>
    %30 = arith.cmpf oge, %28, %29 : vector<8x128xf32>
    %cst_20 = arith.constant 2.000000e-01 : f32
    %31 = vector.broadcast %cst_20 : f32 to vector<8x128xf32>
    %32 = arith.mulf %31, %28 : vector<8x128xf32>
    %33 = arith.select %30, %28, %32 : vector<8x128xi1>, vector<8x128xf32>
    %cst_21 = arith.constant 0.000000e+00 : f32
    %34 = vector.broadcast %cst_21 : f32 to vector<8x128xf32>
    %35 = arith.subf %34, %33 : vector<8x128xf32>
    %36 = math.exp %35 : vector<8x128xf32>
    %cst_22 = arith.constant 1.000000e+00 : f32
    %37 = vector.broadcast %cst_22 : f32 to vector<8x128xf32>
    %38 = arith.addf %37, %36 : vector<8x128xf32>
    %cst_23 = arith.constant 1.000000e+00 : f32
    %39 = vector.broadcast %cst_23 : f32 to vector<8x128xf32>
    %40 = arith.divf %39, %38 : vector<8x128xf32>
    %c0_24 = arith.constant 0 : index
    %c0_25 = arith.constant 0 : index
    %41 = vector.load %arg8[%c0_24, %c0_25] : memref<8x128xf32, #tpu.memory_space<vmem>>, vector<8x128xf32>
    tpu.vector_store %arg8[%c0_24, %c0_25], %40 {strides = array<i32>} : memref<8x128xf32, #tpu.memory_space<vmem>>, vector<8x128xf32>,
    return
  }
  func.func @transform_0(%arg0: i32) -> (i32, i32) {
    %c0_i32 = arith.constant 0 : i32
    %c0_i32_0 = arith.constant 0 : i32
    return %c0_i32, %arg0 : i32, i32
  }
  func.func @transform_1(%arg0: i32) -> (i32, i32) {
    %c0_i32 = arith.constant 0 : i32
    %c0_i32_0 = arith.constant 0 : i32
    %c0_i32_1 = arith.constant 0 : i32
    return %c0_i32, %c0_i32_0 : i32, i32
  }
  func.func @transform_2(%arg0: i32) -> (i32, i32) {
    %c0_i32 = arith.constant 0 : i32
    %c0_i32_0 = arith.constant 0 : i32
    %c0_i32_1 = arith.constant 0 : i32
    return %c0_i32, %c0_i32_0 : i32, i32
  }
  func.func @transform_3(%arg0: i32) -> (i32, i32) {
    %c0_i32 = arith.constant 0 : i32
    %c0_i32_0 = arith.constant 0 : i32
    %c0_i32_1 = arith.constant 0 : i32
    return %c0_i32, %c0_i32_0 : i32, i32
  }
  func.func @transform_4(%arg0: i32) -> (i32, i32) {
    %c0_i32 = arith.constant 0 : i32
    %c0_i32_0 = arith.constant 0 : i32
    %c0_i32_1 = arith.constant 0 : i32
    return %c0_i32, %c0_i32_0 : i32, i32
  }
  func.func @transform_5(%arg0: i32) -> (i32, i32) {
    %c0_i32 = arith.constant 0 : i32
    %c0_i32_0 = arith.constant 0 : i32
    %c0_i32_1 = arith.constant 0 : i32
    return %c0_i32, %c0_i32_0 : i32, i32
  }
  func.func @transform_6(%arg0: i32) -> (i32, i32) {
    %c0_i32 = arith.constant 0 : i32
    %c0_i32_0 = arith.constant 0 : i32
    %c0_i32_1 = arith.constant 0 : i32
    return %c0_i32, %c0_i32_0 : i32, i32
  }
  func.func @transform_7(%arg0: i32) -> (i32, i32) {
    %c0_i32 = arith.constant 0 : i32
    %c0_i32_0 = arith.constant 0 : i32
    return %c0_i32, %arg0 : i32, i32
  }
}

</mosaic_0001>

<llo_original>
// kernel: discriminator1d_forward.1
$region0: #{discriminator1d_forward.1}
  #allocation0 [shape = 'u32[]', space=smem, size = 0x4, offset = 0x4, fixed_abs, tag = 'smem constant byte address 0x4 - core index']
  #allocation1 [shape = 'u32[144,128]{1,0:T(1,128)}', space=vmem, size = 0x12000, scoped, tag = 'internal scratch']
  %s0 = inlined_call_operand.vmem [shape: f32[4,128], index: 0, kind: input, shape index: {}]
  %s1 = inlined_call_operand.vmem [shape: bf16[128,4], index: 1, kind: input, shape index: {}]
  %s2 = inlined_call_operand.vmem [shape: f32[128,1], index: 2, kind: input, shape index: {}]
  %s3 = inlined_call_operand.vmem [shape: bf16[16,128], index: 3, kind: input, shape index: {}]
  %s4 = inlined_call_operand.vmem [shape: f32[16,1], index: 4, kind: input, shape index: {}]
  %s5 = inlined_call_operand.vmem [shape: bf16[8,16], index: 5, kind: input, shape index: {}]
  %s6 = inlined_call_operand.vmem [shape: f32[8,1], index: 6, kind: input, shape index: {}]
  %s7 = inlined_call_operand.vmem [shape: f32[8,128], index: 7, kind: output, shape index: {}]
  %s8 = sld [smem:[#allocation0]]
  $region38: #{discriminator1d_forward.1} parent=0
    _
  %s10 = ssub.s32 1, %s8
  %s11 = scalar_select 0, %s10, %s8
  // Predicated region
  $region2: #{discriminator1d_forward.1} parent=0 // pred_check
    _
  $region3: #{discriminator1d_forward.1} parent=0 // pred_check_branch
    %13 = sbr.rel (0) target = $region5
  $region4: #{discriminator1d_forward.1} parent=0 // pred_region
    _
  $region5: #{discriminator1d_forward.1} parent=0 // pred_fallthru
    _
  // Predicated region
  $region6: #{discriminator1d_forward.1} parent=0 // pred_check
    _
  $region7: #{discriminator1d_forward.1} parent=0 // pred_check_branch
    %15 = sbr.rel (0) target = $region9
  $region8: #{discriminator1d_forward.1} parent=0 // pred_region
    _
  $region9: #{discriminator1d_forward.1} parent=0 // pred_fallthru
    _
  // Predicated region
  $region10: #{discriminator1d_forward.1} parent=0 // pred_check
    _
  $region11: #{discriminator1d_forward.1} parent=0 // pred_check_branch
    %17 = sbr.rel (0) target = $region13
  $region12: #{discriminator1d_forward.1} parent=0 // pred_region
    _
  $region13: #{discriminator1d_forward.1} parent=0 // pred_fallthru
    _
  // Predicated region
  $region14: #{discriminator1d_forward.1} parent=0 // pred_check
    _
  $region15: #{discriminator1d_forward.1} parent=0 // pred_check_branch
    %19 = sbr.rel (0) target = $region17
  $region16: #{discriminator1d_forward.1} parent=0 // pred_region
    _
  $region17: #{discriminator1d_forward.1} parent=0 // pred_fallthru
    _
  // Predicated region
  $region18: #{discriminator1d_forward.1} parent=0 // pred_check
    _
  $region19: #{discriminator1d_forward.1} parent=0 // pred_check_branch
    %21 = sbr.rel (0) target = $region21
  $region20: #{discriminator1d_forward.1} parent=0 // pred_region
    _
  $region21: #{discriminator1d_forward.1} parent=0 // pred_fallthru
    _
  // Predicated region
  $region22: #{discriminator1d_forward.1} parent=0 // pred_check
    _
  $region23: #{discriminator1d_forward.1} parent=0 // pred_check_branch
    %23 = sbr.rel (0) target = $region25
  $region24: #{discriminator1d_forward.1} parent=0 // pred_region
    _
  $region25: #{discriminator1d_forward.1} parent=0 // pred_fallthru
    _
  // Predicated region
  $region26: #{discriminator1d_forward.1} parent=0 // pred_check
    _
  $region27: #{discriminator1d_forward.1} parent=0 // pred_check_branch
    %25 = sbr.rel (0) target = $region29
  $region28: #{discriminator1d_forward.1} parent=0 // pred_region
    _
  $region29: #{discriminator1d_forward.1} parent=0 // pred_fallthru
    _
  %v27 = vld [vmem:[%s0] sm:$0xf]
  %v28 = vpack.c.bf16 %v27, %v27
  %v29 = vld [vmem:[%s1] sm:$0xf]
  %v30 = vld [vmem:[%s1 + $0x4] sm:$0xf]
  %v31 = vld [vmem:[%s1 + $0x8] sm:$0xf]
  %v32 = vld [vmem:[%s1 + $0xc] sm:$0xf]
  %v33 = vld [vmem:[%s1 + $0x10] sm:$0xf]
  %v34 = vld [vmem:[%s1 + $0x14] sm:$0xf]
  %v35 = vld [vmem:[%s1 + $0x18] sm:$0xf]
  %v36 = vld [vmem:[%s1 + $0x1c] sm:$0xf]
  %v37 = vld [vmem:[%s1 + $0x20] sm:$0xf]
  %v38 = vld [vmem:[%s1 + $0x24] sm:$0xf]
  %v39 = vld [vmem:[%s1 + $0x28] sm:$0xf]
  %v40 = vld [vmem:[%s1 + $0x2c] sm:$0xf]
  %v41 = vld [vmem:[%s1 + $0x30] sm:$0xf]
  %v42 = vld [vmem:[%s1 + $0x34] sm:$0xf]
  %v43 = vld [vmem:[%s1 + $0x38] sm:$0xf]
  %v44 = vld [vmem:[%s1 + $0x3c] sm:$0xf]
  %v45 = vld [vmem:[%s2] sm:$0xff]
  %v46 = vld [vmem:[%s2 + $0x8] sm:$0xff]
  %v47 = vld [vmem:[%s2 + $0x10] sm:$0xff]
  %v48 = vld [vmem:[%s2 + $0x18] sm:$0xff]
  %v49 = vld [vmem:[%s2 + $0x20] sm:$0xff]
  %v50 = vld [vmem:[%s2 + $0x28] sm:$0xff]
  %v51 = vld [vmem:[%s2 + $0x30] sm:$0xff]
  %v52 = vld [vmem:[%s2 + $0x38] sm:$0xff]
  %v53 = vld [vmem:[%s2 + $0x40] sm:$0xff]
  %v54 = vld [vmem:[%s2 + $0x48] sm:$0xff]
  %v55 = vld [vmem:[%s2 + $0x50] sm:$0xff]
  %v56 = vld [vmem:[%s2 + $0x58] sm:$0xff]
  %v57 = vld [vmem:[%s2 + $0x60] sm:$0xff]
  %v58 = vld [vmem:[%s2 + $0x68] sm:$0xff]
  %v59 = vld [vmem:[%s2 + $0x70] sm:$0xff]
  %v60 = vld [vmem:[%s2 + $0x78] sm:$0xff]
  %62 = vset.pattern.permute.xlu0 0
  %63 = vperm.xlu0 %62, %v45
  %v64 = vpop.permute.xlu0 %63
  %67 = vset.pattern.permute.xlu0 0
  %68 = vperm.xlu0 %67, %v46
  %v69 = vpop.permute.xlu0 %68
  %72 = vset.pattern.permute.xlu0 0
  %73 = vperm.xlu0 %72, %v47
  %v74 = vpop.permute.xlu0 %73
  %77 = vset.pattern.permute.xlu0 0
  %78 = vperm.xlu0 %77, %v48
  %v79 = vpop.permute.xlu0 %78
  %82 = vset.pattern.permute.xlu0 0
  %83 = vperm.xlu0 %82, %v49
  %v84 = vpop.permute.xlu0 %83
  %87 = vset.pattern.permute.xlu0 0
  %88 = vperm.xlu0 %87, %v50
  %v89 = vpop.permute.xlu0 %88
  %92 = vset.pattern.permute.xlu0 0
  %93 = vperm.xlu0 %92, %v51
  %v94 = vpop.permute.xlu0 %93
  %97 = vset.pattern.permute.xlu0 0
  %98 = vperm.xlu0 %97, %v52
  %v99 = vpop.permute.xlu0 %98
  %102 = vset.pattern.permute.xlu0 0
  %103 = vperm.xlu0 %102, %v53
  %v104 = vpop.permute.xlu0 %103
  %107 = vset.pattern.permute.xlu0 0
  %108 = vperm.xlu0 %107, %v54
  %v109 = vpop.permute.xlu0 %108
  %112 = vset.pattern.permute.xlu0 0
  %113 = vperm.xlu0 %112, %v55
  %v114 = vpop.permute.xlu0 %113
  %117 = vset.pattern.permute.xlu0 0
  %118 = vperm.xlu0 %117, %v56
  %v119 = vpop.permute.xlu0 %118
  %122 = vset.pattern.permute.xlu0 0
  %123 = vperm.xlu0 %122, %v57
  %v124 = vpop.permute.xlu0 %123
  %127 = vset.pattern.permute.xlu0 0
  %128 = vperm.xlu0 %127, %v58
  %v129 = vpop.permute.xlu0 %128
  %132 = vset.pattern.permute.xlu0 0
  %133 = vperm.xlu0 %132, %v59
  %v134 = vpop.permute.xlu0 %133
  %137 = vset.pattern.permute.xlu0 0
  %138 = vperm.xlu0 %137, %v60
  %v139 = vpop.permute.xlu0 %138
  %v157 = vunpack.c.l.b16 %v29
  %v158 = vunpack.c.l.b16 %v30
  %v159 = vunpack.c.l.b16 %v31
  %v160 = vunpack.c.l.b16 %v32
  %v161 = vunpack.c.l.b16 %v33
  %v162 = vunpack.c.l.b16 %v34
  %v163 = vunpack.c.l.b16 %v35
  %v164 = vunpack.c.l.b16 %v36
  %v165 = vunpack.c.l.b16 %v37
  %v166 = vunpack.c.l.b16 %v38
  %v167 = vunpack.c.l.b16 %v39
  %v168 = vunpack.c.l.b16 %v40
  %v169 = vunpack.c.l.b16 %v41
  %v170 = vunpack.c.l.b16 %v42
  %v171 = vunpack.c.l.b16 %v43
  %v172 = vunpack.c.l.b16 %v44
  %v173 = vpack.c.b16 %v158, %v157
  %v174 = vpack.c.b16 %v160, %v159
  %v175 = vpack.c.b16 %v162, %v161
  %v176 = vpack.c.b16 %v164, %v163
  %v177 = vpack.c.b16 %v166, %v165
  %v178 = vpack.c.b16 %v168, %v167
  %v179 = vpack.c.b16 %v170, %v169
  %v180 = vpack.c.b16 %v172, %v171
  %vm181 = vcmask 31744
  %v183 = vsel %vm181, %v173, 0
  %v186 = vsel %vm181, %v174, 0
  %v189 = vsel %vm181, %v175, 0
  %v192 = vsel %vm181, %v176, 0
  %v195 = vsel %vm181, %v177, 0
  %v198 = vsel %vm181, %v178, 0
  %v201 = vsel %vm181, %v179, 0
  %v204 = vsel %vm181, %v180, 0
  %vm206 = vcmask 1041408
  %v208 = vsel %vm206, %v28, 0
  %210 = vmatprep.subr.bf16.mxu0 0
  %211 = vmatpush1.bf16.msra.mxu0 %v208
  %212 = vmatprep.subr.bf16.mxu0 0
  %213 = vmatpush1.bf16.msra.mxu0 0
  %214 = vmatprep.subr.bf16.mxu0 0
  %215 = vmatpush1.bf16.msra.mxu0 0
  %216 = vmatprep.subr.bf16.mxu0 0
  %217 = vmatpush1.bf16.msra.mxu0 0
  %218 = vmatprep.subr.bf16.mxu0 0
  %219 = vmatpush1.bf16.msra.mxu0 0
  %220 = vmatprep.subr.bf16.mxu0 0
  %221 = vmatpush1.bf16.msra.mxu0 0
  %222 = vmatprep.subr.bf16.mxu0 0
  %223 = vmatpush1.bf16.msra.mxu0 0
  %224 = vmatprep.subr.bf16.mxu0 0
  %225 = vmatpush1.bf16.msra.mxu0 0
  %226 = vmatprep.subr.bf16.mxu0 0
  %227 = vmatpush1.bf16.msra.mxu0 0
  %228 = vmatprep.subr.bf16.mxu0 0
  %229 = vmatpush1.bf16.msra.mxu0 0
  %230 = vmatprep.subr.bf16.mxu0 0
  %231 = vmatpush1.bf16.msra.mxu0 0
  %232 = vmatprep.subr.bf16.mxu0 0
  %233 = vmatpush1.bf16.msra.mxu0 0
  %234 = vmatprep.subr.bf16.mxu0 0
  %235 = vmatpush1.bf16.msra.mxu0 0
  %236 = vmatprep.subr.bf16.mxu0 0
  %237 = vmatpush1.bf16.msra.mxu0 0
  %238 = vmatprep.subr.bf16.mxu0 0
  %239 = vmatpush1.bf16.msra.mxu0 0
  %240 = vmatprep.subr.bf16.mxu0 0
  %241 = vmatpush1.bf16.msra.mxu0 0
  %242 = vmatprep.mubr.bf16.mxu0 0
  %243 = vmatmul.mubr.bf16.gmra.mrb[0].mxu0 %v183
  %v244 = vpop.f32.mrb[0].mxu0
  %v245 = vadd.f32 %v64, %v244
  %v246 = vpop.f32.mrb[0].mxu0
  %v247 = vpop.f32.mrb[0].mxu0
  %v248 = vadd.f32 %v69, %v247
  %v249 = vpop.f32.mrb[0].mxu0
  %250 = vmatprep.mubr.bf16.mxu0 0
  %251 = vmatmul.mubr.bf16.gmra.mrb[0].mxu0 %v186
  %v252 = vpop.f32.mrb[0].mxu0
  %v253 = vadd.f32 %v74, %v252
  %v254 = vpop.f32.mrb[0].mxu0
  %v255 = vpop.f32.mrb[0].mxu0
  %v256 = vadd.f32 %v79, %v255
  %v257 = vpop.f32.mrb[0].mxu0
  %258 = vmatprep.mubr.bf16.mxu0 0
  %259 = vmatmul.mubr.bf16.gmra.mrb[0].mxu0 %v189
  %v260 = vpop.f32.mrb[0].mxu0
  %v261 = vadd.f32 %v84, %v260
  %v262 = vpop.f32.mrb[0].mxu0
  %v263 = vpop.f32.mrb[0].mxu0
  %v264 = vadd.f32 %v89, %v263
  %v265 = vpop.f32.mrb[0].mxu0
  %266 = vmatprep.mubr.bf16.mxu0 0
  %267 = vmatmul.mubr.bf16.gmra.mrb[0].mxu0 %v192
  %v268 = vpop.f32.mrb[0].mxu0
  %v269 = vadd.f32 %v94, %v268
  %v270 = vpop.f32.mrb[0].mxu0
  %v271 = vpop.f32.mrb[0].mxu0
  %v272 = vadd.f32 %v99, %v271
  %v273 = vpop.f32.mrb[0].mxu0
  %274 = vmatprep.mubr.bf16.mxu0 0
  %275 = vmatmul.mubr.bf16.gmra.mrb[0].mxu0 %v195
  %v276 = vpop.f32.mrb[0].mxu0
  %v277 = vadd.f32 %v104, %v276
  %v278 = vpop.f32.mrb[0].mxu0
  %v279 = vpop.f32.mrb[0].mxu0
  %v280 = vadd.f32 %v109, %v279
  %v281 = vpop.f32.mrb[0].mxu0
  %282 = vmatprep.mubr.bf16.mxu0 0
  %283 = vmatmul.mubr.bf16.gmra.mrb[0].mxu0 %v198
  %v284 = vpop.f32.mrb[0].mxu0
  %v285 = vadd.f32 %v114, %v284
  %v286 = vpop.f32.mrb[0].mxu0
  %v287 = vpop.f32.mrb[0].mxu0
  %v288 = vadd.f32 %v119, %v287
  %v289 = vpop.f32.mrb[0].mxu0
  %290 = vmatprep.mubr.bf16.mxu0 0
  %291 = vmatmul.mubr.bf16.gmra.mrb[0].mxu0 %v201
  %v292 = vpop.f32.mrb[0].mxu0
  %v293 = vadd.f32 %v124, %v292
  %v294 = vpop.f32.mrb[0].mxu0
  %v295 = vpop.f32.mrb[0].mxu0
  %v296 = vadd.f32 %v129, %v295
  %v297 = vpop.f32.mrb[0].mxu0
  %298 = vmatprep.mubr.bf16.mxu0 0
  %299 = vmatmul.mubr.bf16.gmra.mrb[0].mxu0 %v204
  %v300 = vpop.f32.mrb[0].mxu0
  %v301 = vadd.f32 %v134, %v300
  %v302 = vpop.f32.mrb[0].mxu0
  %v303 = vpop.f32.mrb[0].mxu0
  %v304 = vadd.f32 %v139, %v303
  %v305 = vpop.f32.mrb[0].mxu0
  %306 = vdwg.mxu0
  %vm307 = vcmp.ge.f32.partialorder %v245, 0.0
  %vm308 = vcmp.ge.f32.partialorder %v248, 0.0
  %vm309 = vcmp.ge.f32.partialorder %v253, 0.0
  %vm310 = vcmp.ge.f32.partialorder %v256, 0.0
  %vm311 = vcmp.ge.f32.partialorder %v261, 0.0
  %vm312 = vcmp.ge.f32.partialorder %v264, 0.0
  %vm313 = vcmp.ge.f32.partialorder %v269, 0.0
  %vm314 = vcmp.ge.f32.partialorder %v272, 0.0
  %vm315 = vcmp.ge.f32.partialorder %v277, 0.0
  %vm316 = vcmp.ge.f32.partialorder %v280, 0.0
  %vm317 = vcmp.ge.f32.partialorder %v285, 0.0
  %vm318 = vcmp.ge.f32.partialorder %v288, 0.0
  %vm319 = vcmp.ge.f32.partialorder %v293, 0.0
  %vm320 = vcmp.ge.f32.partialorder %v296, 0.0
  %vm321 = vcmp.ge.f32.partialorder %v301, 0.0
  %vm322 = vcmp.ge.f32.partialorder %v304, 0.0
  %v323 = vmul.f32 %v245, 0.2
  %v324 = vmul.f32 %v248, 0.2
  %v325 = vmul.f32 %v253, 0.2
  %v326 = vmul.f32 %v256, 0.2
  %v327 = vmul.f32 %v261, 0.2
  %v328 = vmul.f32 %v264, 0.2
  %v329 = vmul.f32 %v269, 0.2
  %v330 = vmul.f32 %v272, 0.2
  %v331 = vmul.f32 %v277, 0.2
  %v332 = vmul.f32 %v280, 0.2
  %v333 = vmul.f32 %v285, 0.2
  %v334 = vmul.f32 %v288, 0.2
  %v335 = vmul.f32 %v293, 0.2
  %v336 = vmul.f32 %v296, 0.2
  %v337 = vmul.f32 %v301, 0.2
  %v338 = vmul.f32 %v304, 0.2
  %v339 = vsel %vm307, %v245, %v323
  %v340 = vsel %vm308, %v248, %v324
  %v341 = vsel %vm309, %v253, %v325
  %v342 = vsel %vm310, %v256, %v326
  %v343 = vsel %vm311, %v261, %v327
  %v344 = vsel %vm312, %v264, %v328
  %v345 = vsel %vm313, %v269, %v329
  %v346 = vsel %vm314, %v272, %v330
  %v347 = vsel %vm315, %v277, %v331
  %v348 = vsel %vm316, %v280, %v332
  %v349 = vsel %vm317, %v285, %v333
  %v350 = vsel %vm318, %v288, %v334
  %v351 = vsel %vm319, %v293, %v335
  %v352 = vsel %vm320, %v296, %v336
  %v353 = vsel %vm321, %v301, %v337
  %v354 = vsel %vm322, %v304, %v338
  %v355 = vld [vmem:[%s3] sm:$0xf]
  %v356 = vld [vmem:[%s3 + $0x4] sm:$0xf]
  %v357 = vpack.c.bf16 %v340, %v339
  %v358 = vpack.c.bf16 %v342, %v341
  %v359 = vpack.c.bf16 %v344, %v343
  %v360 = vpack.c.bf16 %v346, %v345
  %v361 = vpack.c.bf16 %v348, %v347
  %v362 = vpack.c.bf16 %v350, %v349
  %v363 = vpack.c.bf16 %v352, %v351
  %v364 = vpack.c.bf16 %v354, %v353
  %v365 = vld [vmem:[%s4] sm:$0xff]
  %v366 = vld [vmem:[%s4 + $0x8] sm:$0xff]
  %368 = vset.pattern.permute.xlu0 0
  %369 = vperm.xlu0 %368, %v365
  %v370 = vpop.permute.xlu0 %369
  %373 = vset.pattern.permute.xlu0 0
  %374 = vperm.xlu0 %373, %v366
  %v375 = vpop.permute.xlu0 %374
  %v379 = vunpack.c.l.b16 %v355
  %v380 = vunpack.c.l.b16 %v356
  %v381 = vpack.c.b16 %v380, %v379
  %383 = vmatprep.subr.bf16.mxu0 0
  %384 = vmatpush1.bf16.msra.mxu0 %v357
  %385 = vmatprep.subr.bf16.mxu0 0
  %386 = vmatpush1.bf16.msra.mxu0 %v358
  %387 = vmatprep.subr.bf16.mxu0 0
  %388 = vmatpush1.bf16.msra.mxu0 %v359
  %389 = vmatprep.subr.bf16.mxu0 0
  %390 = vmatpush1.bf16.msra.mxu0 %v360
  %391 = vmatprep.subr.bf16.mxu0 0
  %392 = vmatpush1.bf16.msra.mxu0 %v361
  %393 = vmatprep.subr.bf16.mxu0 0
  %394 = vmatpush1.bf16.msra.mxu0 %v362
  %395 = vmatprep.subr.bf16.mxu0 0
  %396 = vmatpush1.bf16.msra.mxu0 %v363
  %397 = vmatprep.subr.bf16.mxu0 0
  %398 = vmatpush1.bf16.msra.mxu0 %v364
  %399 = vmatprep.subr.bf16.mxu0 0
  %400 = vmatpush1.bf16.msra.mxu0 0
  %401 = vmatprep.subr.bf16.mxu0 0
  %402 = vmatpush1.bf16.msra.mxu0 0
  %403 = vmatprep.subr.bf16.mxu0 0
  %404 = vmatpush1.bf16.msra.mxu0 0
  %405 = vmatprep.subr.bf16.mxu0 0
  %406 = vmatpush1.bf16.msra.mxu0 0
  %407 = vmatprep.subr.bf16.mxu0 0
  %408 = vmatpush1.bf16.msra.mxu0 0
  %409 = vmatprep.subr.bf16.mxu0 0
  %410 = vmatpush1.bf16.msra.mxu0 0
  %411 = vmatprep.subr.bf16.mxu0 0
  %412 = vmatpush1.bf16.msra.mxu0 0
  %413 = vmatprep.subr.bf16.mxu0 0
  %414 = vmatpush1.bf16.msra.mxu0 0
  %415 = vmatprep.mubr.bf16.mxu0 0
  %416 = vmatmul.mubr.bf16.gmra.mrb[0].mxu0 %v381
  %v417 = vpop.f32.mrb[0].mxu0
  %v418 = vadd.f32 %v370, %v417
  %v419 = vpop.f32.mrb[0].mxu0
  %v420 = vpop.f32.mrb[0].mxu0
  %v421 = vadd.f32 %v375, %v420
  %v422 = vpop.f32.mrb[0].mxu0
  %423 = vdwg.mxu0
  %vm424 = vcmp.ge.f32.partialorder %v418, 0.0
  %vm425 = vcmp.ge.f32.partialorder %v421, 0.0
  %v426 = vmul.f32 %v418, 0.2
  %v427 = vmul.f32 %v421, 0.2
  %v428 = vsel %vm424, %v418, %v426
  %v429 = vsel %vm425, %v421, %v427
  %v430 = vld [vmem:[%s5] sm:$0xf]
  %v431 = vpack.c.bf16 %v429, %v428
  %v432 = vld [vmem:[%s6] sm:$0xff]
  %434 = vset.pattern.permute.xlu0 0
  %435 = vperm.xlu0 %434, %v432
  %v436 = vpop.permute.xlu0 %435
  %vm438 = vcmask 130048
  %v440 = vsel %vm438, %v430, 0
  %442 = vmatprep.subr.bf16.mxu0 0
  %443 = vmatpush1.bf16.msra.mxu0 %v431
  %444 = vmatprep.subr.bf16.mxu0 0
  %445 = vmatpush1.bf16.msra.mxu0 0
  %446 = vmatprep.subr.bf16.mxu0 0
  %447 = vmatpush1.bf16.msra.mxu0 0
  %448 = vmatprep.subr.bf16.mxu0 0
  %449 = vmatpush1.bf16.msra.mxu0 0
  %450 = vmatprep.subr.bf16.mxu0 0
  %451 = vmatpush1.bf16.msra.mxu0 0
  %452 = vmatprep.subr.bf16.mxu0 0
  %453 = vmatpush1.bf16.msra.mxu0 0
  %454 = vmatprep.subr.bf16.mxu0 0
  %455 = vmatpush1.bf16.msra.mxu0 0
  %456 = vmatprep.subr.bf16.mxu0 0
  %457 = vmatpush1.bf16.msra.mxu0 0
  %458 = vmatprep.subr.bf16.mxu0 0
  %459 = vmatpush1.bf16.msra.mxu0 0
  %460 = vmatprep.subr.bf16.mxu0 0
  %461 = vmatpush1.bf16.msra.mxu0 0
  %462 = vmatprep.subr.bf16.mxu0 0
  %463 = vmatpush1.bf16.msra.mxu0 0
  %464 = vmatprep.subr.bf16.mxu0 0
  %465 = vmatpush1.bf16.msra.mxu0 0
  %466 = vmatprep.subr.bf16.mxu0 0
  %467 = vmatpush1.bf16.msra.mxu0 0
  %468 = vmatprep.subr.bf16.mxu0 0
  %469 = vmatpush1.bf16.msra.mxu0 0
  %470 = vmatprep.subr.bf16.mxu0 0
  %471 = vmatpush1.bf16.msra.mxu0 0
  %472 = vmatprep.subr.bf16.mxu0 0
  %473 = vmatpush1.bf16.msra.mxu0 0
  %474 = vmatprep.mubr.bf16.mxu0 0
  %475 = vmatmul.mubr.bf16.gmra.mrb[0].mxu0 %v440
  %v476 = vpop.f32.mrb[0].mxu0
  %v477 = vadd.f32 %v436, %v476
  %v478 = vpop.f32.mrb[0].mxu0
  %v479 = vpop.f32.mrb[0].mxu0
  %v480 = vpop.f32.mrb[0].mxu0
  %481 = vdwg.mxu0
  %vm482 = vcmp.ge.f32.partialorder %v477, 0.0
  %v483 = vmul.f32 %v477, 0.2
  %v484 = vsel %vm482, %v477, %v483
  %v485 = vsub.f32 0.0, %v484
  %v486 = vmul.f32 %v485, 1.442695
  %v487 = vpow.pop %v486
  %v488 = vadd.f32 %v487, 1.0
  %v489 = vrcp.pop %v488
  %v490 = vmul.f32 1.0, %v489
  %491 = vst [vmem:[%s7] sm:$0xff] %v490
  // Predicated region
  $region30: #{discriminator1d_forward.1} parent=0 // pred_check
    _
  $region31: #{discriminator1d_forward.1} parent=0 // pred_check_branch
    %493 = sbr.rel (0) target = $region33
  $region32: #{discriminator1d_forward.1} parent=0 // pred_region
    _
  $region33: #{discriminator1d_forward.1} parent=0 // pred_fallthru
    _
  // Predicated region
  $region34: #{discriminator1d_forward.1} parent=0 // pred_check
    _
  $region35: #{discriminator1d_forward.1} parent=0 // pred_check_branch
    %495 = sbr.rel (0) target = $region37
  $region36: #{discriminator1d_forward.1} parent=0 // pred_region
    _
  $region37: #{discriminator1d_forward.1} parent=0 // pred_fallthru
    _

</llo_original>
